<compile_context>
chip_gen: v5e
topology: v5e:2x2
jax: 0.10.0
libtpu: 0.0.40
codegen_flags: <defaults>
</compile_context>

<pallas_src>
import functools

import jax
import jax.numpy as jnp
from jax.experimental import pallas as pl
from jax.experimental.pallas import tpu as pltpu

LANE = 128


def _round_up(n, m):
    return ((n + m - 1) // m) * m


def policy_net_kernel(x_ref, w1_ref, w2_ref, w3_ref, p_ref):
    """One step: (B, in_p) -> (B, out_p) probabilities (softmax over dim=0)."""
    x = x_ref[...]

    # fc1 + ReLU (bias folded into w1 via the ones-carrier column of x).
    h1 = jnp.maximum(
        jnp.dot(x, w1_ref[...], preferred_element_type=jnp.float32), 0.0)

    # fc2 + ReLU (carrier column of h1 is exactly 1.0 -> folded bias row of w2
    # adds b2; ReLU(1)=1 keeps the carrier alive for the next layer).
    h2 = jnp.maximum(
        jnp.dot(h1, w2_ref[...], preferred_element_type=jnp.float32), 0.0)

    # fc3 (bias folded via carrier row of w3).
    logits = jnp.dot(h2, w3_ref[...], preferred_element_type=jnp.float32)

    # softmax over dim=0 (batch axis of this step), numerically stabilized.
    m = jnp.max(logits, axis=0, keepdims=True)
    e = jnp.exp(logits - m)
    s = jnp.sum(e, axis=0, keepdims=True)
    p_ref[...] = (e / s).astype(p_ref.dtype)


def prepare_params(params):
    """One-time preprocessing: fold biases into lane-padded augmented weights.

    Hoisted out of the per-call forward: at these shapes the kernel is pure
    dispatch overhead, and the ~12 XLA ops that used to rebuild padded weights
    every call cost more wall time than the kernel itself.
    """
    w1, b1 = params["fc1"]
    w2, b2 = params["fc2"]
    w3, b3 = params["fc3"]

    in_dim, h1_dim = w1.shape[1], w1.shape[0]
    h2_dim, out_dim = w2.shape[0], w3.shape[0]

    # Lane-dense padded dims (leave room for the bias-carrier column/row).
    in_p = _round_up(in_dim + 1, LANE)
    h1_p = _round_up(h1_dim + 1, LANE)
    h2_p = _round_up(h2_dim + 1, LANE)
    out_p = _round_up(out_dim, LANE)

    # fc1: (in_p, h1_p); row `in_dim` holds b1; carrier->carrier weight = 1.
    w1_aug = jnp.zeros((in_p, h1_p), jnp.float32)
    w1_aug = w1_aug.at[:in_dim, :h1_dim].set(w1.T.astype(jnp.float32))
    w1_aug = w1_aug.at[in_dim, :h1_dim].set(b1.astype(jnp.float32))
    w1_aug = w1_aug.at[in_dim, h1_dim].set(1.0)

    # fc2: (h1_p, h2_p); carrier row holds b2; carrier propagates.
    w2_aug = jnp.zeros((h1_p, h2_p), jnp.float32)
    w2_aug = w2_aug.at[:h1_dim, :h2_dim].set(w2.T.astype(jnp.float32))
    w2_aug = w2_aug.at[h1_dim, :h2_dim].set(b2.astype(jnp.float32))
    w2_aug = w2_aug.at[h1_dim, h2_dim].set(1.0)

    # fc3: (h2_p, out_p); carrier row holds b3.
    w3_aug = jnp.zeros((h2_p, out_p), jnp.float32)
    w3_aug = w3_aug.at[:h2_dim, :out_dim].set(w3.T.astype(jnp.float32))
    w3_aug = w3_aug.at[h2_dim, :out_dim].set(b3.astype(jnp.float32))

    # TODO(synk): optionally cast x/weights to bfloat16 for the fast MXU path
    # on v5e (keep preferred_element_type=f32); skipped here to keep the
    # forward bit-tight against the f32 reference.
    return {
        "w1_aug": jax.device_put(w1_aug),
        "w2_aug": jax.device_put(w2_aug),
        "w3_aug": jax.device_put(w3_aug),
        "dims": (in_dim, out_dim),
    }


@functools.partial(jax.jit, static_argnums=(4, 5))
def _stacked_forward_impl(xs, w1_aug, w2_aug, w3_aug, in_dim, out_dim):
    N, B, _ = xs.shape
    in_p, h1_p = w1_aug.shape
    h2_p = w2_aug.shape[1]
    out_p = w3_aug.shape[1]

    # Single concatenate: real features | constant-1 bias carrier | zero pad.
    xs = xs.astype(jnp.float32)
    xs_aug = jnp.concatenate(
        [xs,
         jnp.ones((N, B, 1), jnp.float32),
         jnp.zeros((N, B, in_p - in_dim - 1), jnp.float32)],
        axis=-1)

    # Advisory cost estimate: tiny kernel, don't serialize around it.
    flops = 2 * N * B * (in_p * h1_p + h1_p * h2_p + h2_p * out_p)
    transcendentals = N * B * out_p
    bytes_accessed = 4 * (N * B * (in_p + out_p)
                          + in_p * h1_p + h1_p * h2_p + h2_p * out_p)
    cost = pl.CostEstimate(flops=flops, transcendentals=transcendentals,
                           bytes_accessed=bytes_accessed)

    # Total resident footprint is ~200 KiB (3 weight tiles + per-step x/out
    # blocks), far under the default scoped VMEM on v5e/v6e/v7x — no
    # vmem_limit_bytes override needed even for thousands of stacked steps.
    p_pad = pl.pallas_call(
        policy_net_kernel,
        out_shape=jax.ShapeDtypeStruct((N, B, out_p), jnp.float32),
        grid=(N,),
        in_specs=[
            # Per-step activation block; leading step dim squeezed away.
            pl.BlockSpec((None, B, in_p), lambda i: (i, 0, 0)),
            # Weights: constant block index -> DMA'd once, VMEM-resident.
            pl.BlockSpec((in_p, h1_p), lambda i: (0, 0)),
            pl.BlockSpec((h1_p, h2_p), lambda i: (0, 0)),
            pl.BlockSpec((h2_p, out_p), lambda i: (0, 0)),
        ],
        out_specs=pl.BlockSpec((None, B, out_p), lambda i: (i, 0, 0)),
        compiler_params=pltpu.CompilerParams(
            # Step axis is independent -> shard across v7x's 2 TensorCores.
            dimension_semantics=("parallel",)),
        cost_estimate=cost,
    )(xs_aug, w1_aug, w2_aug, w3_aug)

    # Padded columns hold a meaningless uniform softmax — slice them off.
    return p_pad[:, :, :out_dim]


def policy_net_forward_stacked(xs, prepared):
    """xs: (N, B, in_dim) -> (N, B, out_dim). Each step softmaxed over its own dim 0."""
    in_dim, out_dim = prepared["dims"]
    return _stacked_forward_impl(xs, prepared["w1_aug"], prepared["w2_aug"],
                                 prepared["w3_aug"], in_dim, out_dim)


def policy_net_forward(x, prepared):
    """x: (B, in_dim) -> (B, out_dim). Matches PolicyNet.forward."""
    return policy_net_forward_stacked(x[None], prepared)[0]
    # TODO(synk): if many steps share identical batch size, also consider
    # folding them into the matmul M dimension (N*B rows) for fuller MXU
    # utilization on v6e; the grid version already removes the dispatch cost.


def init_params(key, in_dim, hidden_dims, out_dim):
    """Deterministic init mimicking nn.Linear's U(-1/sqrt(fan_in), 1/sqrt(fan_in))."""
    dims = [(in_dim, hidden_dims[0]),
            (hidden_dims[0], hidden_dims[1]),
            (hidden_dims[1], out_dim)]
    names = ["fc1", "fc2", "fc3"]
    params = {}
    for name, (fan_in, fan_out) in zip(names, dims):
        key, kw, kb = jax.random.split(key, 3)
        bound = 1.0 / jnp.sqrt(jnp.float32(fan_in))
        w = jax.random.uniform(kw, (fan_out, fan_in), jnp.float32,
                               minval=-bound, maxval=bound)  # torch layout (out, in)
        b = jax.random.uniform(kb, (fan_out,), jnp.float32,
                               minval=-bound, maxval=bound)
        params[name] = (w, b)
    return params


def _reference_forward(x, params):
    w1, b1 = params["fc1"]
    w2, b2 = params["fc2"]
    w3, b3 = params["fc3"]
    h1 = jnp.maximum(x @ w1.T + b1, 0.0)
    h2 = jnp.maximum(h1 @ w2.T + b2, 0.0)
    return jax.nn.softmax(h2 @ w3.T + b3, axis=0)


if __name__ == "__main__":
    key = jax.random.PRNGKey(0)
    B, in_dim, hidden_dims, out_dim = 8, 16, (32, 32), 8
    N_steps = 4

    key, kx, kxs, kp = jax.random.split(key, 4)
    x = jax.random.normal(kx, (B, in_dim), jnp.float32)
    xs = jax.random.normal(kxs, (N_steps, B, in_dim), jnp.float32)
    params = init_params(kp, in_dim, hidden_dims, out_dim)

    prepared = prepare_params(params)  # one-time weight folding/padding

    # Single-step forward (matches PolicyNet.forward).
    p = policy_net_forward(x, prepared)
    jax.block_until_ready(p)
    ref = _reference_forward(x, params)
    assert p.shape == (B, out_dim)
    assert jnp.allclose(p, ref, atol=1e-4, rtol=1e-4), float(jnp.max(jnp.abs(p - ref)))

    # Stacked multi-step forward (grid=(N,), weights VMEM-resident).
    ps = policy_net_forward_stacked(xs, prepared)
    jax.block_until_ready(ps)
    refs = jax.vmap(lambda xi: _reference_forward(xi, params))(xs)
    assert ps.shape == (N_steps, B, out_dim)
    assert jnp.allclose(ps, refs, atol=1e-4, rtol=1e-4), float(jnp.max(jnp.abs(ps - refs)))

    print("KERNEL_OK")
</pallas_src>

<mosaic_0001>
module attributes {stable_mosaic.version = 11 : i64} {
  func.func @policy_net_kernel(%arg0: i32, %arg1: memref<1x8x128xf32, #tpu.memory_space<vmem>>, %arg2: memref<128x128xf32, #tpu.memory_space<vmem>>, %arg3: memref<128x128xf32, #tpu.memory_space<vmem>>, %arg4: memref<128x128xf32, #tpu.memory_space<vmem>>, %arg5: memref<1x8x128xf32, #tpu.memory_space<vmem>>) attributes {dimension_semantics = [#tpu.dimension_semantics<parallel>], iteration_bounds = array<i64: 1>, scalar_prefetch = 0 : i64, scratch_operands = 0 : i64, tpu.core_type = #tpu.core_type<tc>, window_params = [{transform_indices = @transform_0, window_bounds = array<i64: 1, 8, 128>}, {pipeline_mode = #tpu.pipeline_mode<synchronous>, transform_indices = @transform_1, window_bounds = array<i64: 128, 128>}, {pipeline_mode = #tpu.pipeline_mode<synchronous>, transform_indices = @transform_2, window_bounds = array<i64: 128, 128>}, {pipeline_mode = #tpu.pipeline_mode<synchronous>, transform_indices = @transform_3, window_bounds = array<i64: 128, 128>}, {transform_indices = @transform_4, window_bounds = array<i64: 1, 8, 128>}]} {
    %c0 = arith.constant 0 : index
    %c0_0 = arith.constant 0 : index
    %c0_1 = arith.constant 0 : index
    %0 = vector.load %arg1[%c0, %c0_0, %c0_1] : memref<1x8x128xf32, #tpu.memory_space<vmem>>, vector<1x8x128xf32>
    %1 = vector.shape_cast %0 : vector<1x8x128xf32> to vector<8x128xf32>
    %c0_2 = arith.constant 0 : index
    %c0_3 = arith.constant 0 : index
    %2 = vector.load %arg2[%c0_2, %c0_3] : memref<128x128xf32, #tpu.memory_space<vmem>>, vector<128x128xf32>
    %cst = arith.constant dense<0.000000e+00> : vector<8x128xf32>
    %3 = tpu.matmul %1, %2, %cst {dimension_numbers = #tpu.dot_dimension_numbers<[1], [0], [0], [1], [0, 0, 1, 1], [], []>} : vector<8x128xf32>, vector<128x128xf32>, vector<8x128xf32> -> vector<8x128xf32>
    %cst_4 = arith.constant 0.000000e+00 : f32
    %4 = vector.broadcast %cst_4 : f32 to vector<8x128xf32>
    %5 = arith.maximumf %3, %4 : vector<8x128xf32>
    %c0_5 = arith.constant 0 : index
    %c0_6 = arith.constant 0 : index
    %6 = vector.load %arg3[%c0_5, %c0_6] : memref<128x128xf32, #tpu.memory_space<vmem>>, vector<128x128xf32>
    %cst_7 = arith.constant dense<0.000000e+00> : vector<8x128xf32>
    %7 = tpu.matmul %5, %6, %cst_7 {dimension_numbers = #tpu.dot_dimension_numbers<[1], [0], [0], [1], [0, 0, 1, 1], [], []>} : vector<8x128xf32>, vector<128x128xf32>, vector<8x128xf32> -> vector<8x128xf32>
    %cst_8 = arith.constant 0.000000e+00 : f32
    %8 = vector.broadcast %cst_8 : f32 to vector<8x128xf32>
    %9 = arith.maximumf %7, %8 : vector<8x128xf32>
    %c0_9 = arith.constant 0 : index
    %c0_10 = arith.constant 0 : index
    %10 = vector.load %arg4[%c0_9, %c0_10] : memref<128x128xf32, #tpu.memory_space<vmem>>, vector<128x128xf32>
    %cst_11 = arith.constant dense<0.000000e+00> : vector<8x128xf32>
    %11 = tpu.matmul %9, %10, %cst_11 {dimension_numbers = #tpu.dot_dimension_numbers<[1], [0], [0], [1], [0, 0, 1, 1], [], []>} : vector<8x128xf32>, vector<128x128xf32>, vector<8x128xf32> -> vector<8x128xf32>
    %cst_12 = arith.constant dense<0xFF800000> : vector<128xf32>
    %12 = vector.multi_reduction <maximumf>, %11, %cst_12 [0] : vector<8x128xf32> to vector<128xf32>
    %13 = vector.shape_cast %12 : vector<128xf32> to vector<1x128xf32>
    %14 = vector.broadcast %13 : vector<1x128xf32> to vector<8x128xf32>
    %15 = arith.subf %11, %14 : vector<8x128xf32>
    %16 = math.exp %15 : vector<8x128xf32>
    %cst_13 = arith.constant dense<0.000000e+00> : vector<128xf32>
    %17 = vector.multi_reduction <add>, %16, %cst_13 [0] : vector<8x128xf32> to vector<128xf32>
    %18 = vector.shape_cast %17 : vector<128xf32> to vector<1x128xf32>
    %19 = vector.broadcast %18 : vector<1x128xf32> to vector<8x128xf32>
    %20 = arith.divf %16, %19 : vector<8x128xf32>
    %c0_14 = arith.constant 0 : index
    %c0_15 = arith.constant 0 : index
    %c0_16 = arith.constant 0 : index
    %21 = vector.load %arg5[%c0_14, %c0_15, %c0_16] : memref<1x8x128xf32, #tpu.memory_space<vmem>>, vector<1x8x128xf32>
    %22 = vector.shape_cast %21 : vector<1x8x128xf32> to vector<8x128xf32>
    %23 = vector.shape_cast %20 : vector<8x128xf32> to vector<1x8x128xf32>
    tpu.vector_store %arg5[%c0_14, %c0_15, %c0_16], %23 {strides = array<i32>} : memref<1x8x128xf32, #tpu.memory_space<vmem>>, vector<1x8x128xf32>,
    return
  }
  func.func @transform_0(%arg0: i32) -> (i32, i32, i32) {
    %c0_i32 = arith.constant 0 : i32
    %c0_i32_0 = arith.constant 0 : i32
    %c0_i32_1 = arith.constant 0 : i32
    return %arg0, %c0_i32, %c0_i32_0 : i32, i32, i32
  }
  func.func @transform_1(%arg0: i32) -> (i32, i32) {
    %c0_i32 = arith.constant 0 : i32
    %c0_i32_0 = arith.constant 0 : i32
    %c0_i32_1 = arith.constant 0 : i32
    return %c0_i32, %c0_i32_0 : i32, i32
  }
  func.func @transform_2(%arg0: i32) -> (i32, i32) {
    %c0_i32 = arith.constant 0 : i32
    %c0_i32_0 = arith.constant 0 : i32
    %c0_i32_1 = arith.constant 0 : i32
    return %c0_i32, %c0_i32_0 : i32, i32
  }
  func.func @transform_3(%arg0: i32) -> (i32, i32) {
    %c0_i32 = arith.constant 0 : i32
    %c0_i32_0 = arith.constant 0 : i32
    %c0_i32_1 = arith.constant 0 : i32
    return %c0_i32, %c0_i32_0 : i32, i32
  }
  func.func @transform_4(%arg0: i32) -> (i32, i32, i32) {
    %c0_i32 = arith.constant 0 : i32
    %c0_i32_0 = arith.constant 0 : i32
    %c0_i32_1 = arith.constant 0 : i32
    return %arg0, %c0_i32, %c0_i32_0 : i32, i32, i32
  }
}

</mosaic_0001>

<llo_original>
// kernel: _stacked_forward_impl.1
$region0: #{_stacked_forward_impl.1}
  #allocation0 [shape = 'u32[]', space=smem, size = 0x4, offset = 0x4, fixed_abs, tag = 'smem constant byte address 0x4 - core index']
  #allocation1 [shape = 'u32[72,128]{1,0:T(1,128)}', space=vmem, size = 0x9000, scoped, tag = 'internal scratch']
  %s0 = inlined_call_operand.vmem [shape: f32[1,8,128], index: 0, kind: input, shape index: {}]
  %s1 = inlined_call_operand.hbm [shape: f32[128,128], index: 1, kind: input, shape index: {}]
  %s2 = inlined_call_operand.hbm [shape: f32[128,128], index: 2, kind: input, shape index: {}]
  %s3 = inlined_call_operand.hbm [shape: f32[128,128], index: 3, kind: input, shape index: {}]
  %s4 = inlined_call_operand.hbm [shape: f32[1,8,128], index: 4, kind: output, shape index: {}]
  %s5 = sld [smem:[#allocation0]]
  $region38: #{_stacked_forward_impl.1} parent=0
    _
  %s7 = ssub.s32 1, %s5
  %s8 = scalar_select 0, %s7, %s5
  $region1: #{_stacked_forward_impl.1} parent=0
    #allocation2 [shape = 'u8[65536]{0}', space=vmem, size = 0x10000, scoped, tag = 'input window, operand 1, single buffered']
    #allocation3 [shape = 's32[1]{0}', space=sflag, size = 0x4, scoped, tag = 'scoped memory for _stacked_forward_impl.1']
    #allocation4 [shape = 's32[1]{0}', space=sflag, size = 0x4, scoped, tag = 'scoped memory for _stacked_forward_impl.1']
    #allocation5 [shape = 'u8[65536]{0}', space=vmem, size = 0x10000, scoped, tag = 'input window, operand 2, single buffered']
    #allocation6 [shape = 's32[1]{0}', space=sflag, size = 0x4, scoped, tag = 'scoped memory for _stacked_forward_impl.1']
    #allocation7 [shape = 'u8[65536]{0}', space=vmem, size = 0x10000, scoped, tag = 'input window, operand 3, single buffered']
    #allocation8 [shape = 'u8[4096]{0}', space=vmem, size = 0x1000, scoped, tag = 'output window, operand 0, single buffered']
    %9 = vsyncpa [#allocation3], 0
    %10 = vsyncpa [#allocation6], 0
    %11 = vsyncpa [#allocation4], 0
    // Predicated region
    $region2: #{_stacked_forward_impl.1} parent=1 // pred_check
      _
    $region3: #{_stacked_forward_impl.1} parent=1 // pred_check_branch
      %13 = sbr.rel (0) target = $region5
    $region4: #{_stacked_forward_impl.1} parent=1 // pred_region
      _
    $region5: #{_stacked_forward_impl.1} parent=1 // pred_fallthru
      _
    // Predicated region
    $region6: #{_stacked_forward_impl.1} parent=1 // pred_check
      _
    $region7: #{_stacked_forward_impl.1} parent=1 // pred_check_branch
      %15 = sbr.rel (0) target = $region9
    $region8: #{_stacked_forward_impl.1} parent=1 // pred_region
      %17 = vsyncadd [#allocation3], 0
      %s18 = sshll.u32 %s1, 4
      %s19 = int_to_ptr.hbm [resolvable:$true] %s18
      %s20 = sshll.u32 [#allocation2], 4
      %s21 = int_to_ptr.vmem [resolvable:$true] %s20
      %26 = dma.hbm_to_vmem [thread:$0]  %s19, 2048, %s21, [#allocation3], 128, 128, 8
    $region9: #{_stacked_forward_impl.1} parent=1 // pred_fallthru
      _
    // Predicated region
    $region10: #{_stacked_forward_impl.1} parent=1 // pred_check
      _
    $region11: #{_stacked_forward_impl.1} parent=1 // pred_check_branch
      %28 = sbr.rel (0) target = $region13
    $region12: #{_stacked_forward_impl.1} parent=1 // pred_region
      %30 = vsyncadd [#allocation6], 0
      %s31 = sshll.u32 %s2, 4
      %s32 = int_to_ptr.hbm [resolvable:$true] %s31
      %s33 = sshll.u32 [#allocation5], 4
      %s34 = int_to_ptr.vmem [resolvable:$true] %s33
      %39 = dma.hbm_to_vmem [thread:$0]  %s32, 2048, %s34, [#allocation6], 128, 128, 8
    $region13: #{_stacked_forward_impl.1} parent=1 // pred_fallthru
      _
    // Predicated region
    $region14: #{_stacked_forward_impl.1} parent=1 // pred_check
      _
    $region15: #{_stacked_forward_impl.1} parent=1 // pred_check_branch
      %41 = sbr.rel (0) target = $region17
    $region16: #{_stacked_forward_impl.1} parent=1 // pred_region
      %43 = vsyncadd [#allocation6], 0
      %s44 = sshll.u32 %s3, 4
      %s45 = int_to_ptr.hbm [resolvable:$true] %s44
      %s46 = sshll.u32 [#allocation7], 4
      %s47 = int_to_ptr.vmem [resolvable:$true] %s46
      %52 = dma.hbm_to_vmem [thread:$0]  %s45, 2048, %s47, [#allocation6], 128, 128, 8
    $region17: #{_stacked_forward_impl.1} parent=1 // pred_fallthru
      _
    // Predicated region
    $region18: #{_stacked_forward_impl.1} parent=1 // pred_check
      _
    $region19: #{_stacked_forward_impl.1} parent=1 // pred_check_branch
      %54 = sbr.rel (0) target = $region21
    $region20: #{_stacked_forward_impl.1} parent=1 // pred_region
      %56 = dma.done [#allocation3], 2048
    $region21: #{_stacked_forward_impl.1} parent=1 // pred_fallthru
      _
    // Predicated region
    $region22: #{_stacked_forward_impl.1} parent=1 // pred_check
      _
    $region23: #{_stacked_forward_impl.1} parent=1 // pred_check_branch
      %58 = sbr.rel (0) target = $region25
    $region24: #{_stacked_forward_impl.1} parent=1 // pred_region
      %60 = dma.done [#allocation6], 2048
    $region25: #{_stacked_forward_impl.1} parent=1 // pred_fallthru
      _
    // Predicated region
    $region26: #{_stacked_forward_impl.1} parent=1 // pred_check
      _
    $region27: #{_stacked_forward_impl.1} parent=1 // pred_check_branch
      %62 = sbr.rel (0) target = $region29
    $region28: #{_stacked_forward_impl.1} parent=1 // pred_region
      %64 = dma.done [#allocation6], 2048
    $region29: #{_stacked_forward_impl.1} parent=1 // pred_fallthru
      _
    %v65 = vld [vmem:[%s0] sm:$0xff]
    %v66 = vld [vmem:[#allocation2] sm:$0xff]
    %v67 = vld [vmem:[#allocation2 + $0x8] sm:$0xff]
    %v68 = vld [vmem:[#allocation2 + $0x10] sm:$0xff]
    %v69 = vld [vmem:[#allocation2 + $0x18] sm:$0xff]
    %v70 = vld [vmem:[#allocation2 + $0x20] sm:$0xff]
    %v71 = vld [vmem:[#allocation2 + $0x28] sm:$0xff]
    %v72 = vld [vmem:[#allocation2 + $0x30] sm:$0xff]
    %v73 = vld [vmem:[#allocation2 + $0x38] sm:$0xff]
    %v74 = vld [vmem:[#allocation2 + $0x40] sm:$0xff]
    %v75 = vld [vmem:[#allocation2 + $0x48] sm:$0xff]
    %v76 = vld [vmem:[#allocation2 + $0x50] sm:$0xff]
    %v77 = vld [vmem:[#allocation2 + $0x58] sm:$0xff]
    %v78 = vld [vmem:[#allocation2 + $0x60] sm:$0xff]
    %v79 = vld [vmem:[#allocation2 + $0x68] sm:$0xff]
    %v80 = vld [vmem:[#allocation2 + $0x70] sm:$0xff]
    %v81 = vld [vmem:[#allocation2 + $0x78] sm:$0xff]
    %82 = vmatpush.msra.mxu0 %v81
    %83 = vmatpush.msra.mxu0 %v80
    %84 = vmatpush.msra.mxu0 %v79
    %85 = vmatpush.msra.mxu0 %v78
    %86 = vmatpush.msra.mxu0 %v77
    %87 = vmatpush.msra.mxu0 %v76
    %88 = vmatpush.msra.mxu0 %v75
    %89 = vmatpush.msra.mxu0 %v74
    %90 = vmatpush.msra.mxu0 %v73
    %91 = vmatpush.msra.mxu0 %v72
    %92 = vmatpush.msra.mxu0 %v71
    %93 = vmatpush.msra.mxu0 %v70
    %94 = vmatpush.msra.mxu0 %v69
    %95 = vmatpush.msra.mxu0 %v68
    %96 = vmatpush.msra.mxu0 %v67
    %97 = vmatpush.msra.mxu0 %v66
    %98 = vmatmul.f32.gmra.mxu0 %v65
    %v99 = vpop.f32.mrf.mxu0
    %v100 = vadd.f32 0.0, %v99
    %101 = vdwg.mxu0
    %v102 = vmax.f32 %v100, 0.0
    %v103 = vld [vmem:[#allocation5] sm:$0xff]
    %v104 = vld [vmem:[#allocation5 + $0x8] sm:$0xff]
    %v105 = vld [vmem:[#allocation5 + $0x10] sm:$0xff]
    %v106 = vld [vmem:[#allocation5 + $0x18] sm:$0xff]
    %v107 = vld [vmem:[#allocation5 + $0x20] sm:$0xff]
    %v108 = vld [vmem:[#allocation5 + $0x28] sm:$0xff]
    %v109 = vld [vmem:[#allocation5 + $0x30] sm:$0xff]
    %v110 = vld [vmem:[#allocation5 + $0x38] sm:$0xff]
    %v111 = vld [vmem:[#allocation5 + $0x40] sm:$0xff]
    %v112 = vld [vmem:[#allocation5 + $0x48] sm:$0xff]
    %v113 = vld [vmem:[#allocation5 + $0x50] sm:$0xff]
    %v114 = vld [vmem:[#allocation5 + $0x58] sm:$0xff]
    %v115 = vld [vmem:[#allocation5 + $0x60] sm:$0xff]
    %v116 = vld [vmem:[#allocation5 + $0x68] sm:$0xff]
    %v117 = vld [vmem:[#allocation5 + $0x70] sm:$0xff]
    %v118 = vld [vmem:[#allocation5 + $0x78] sm:$0xff]
    %119 = vmatpush.msra.mxu0 %v118
    %120 = vmatpush.msra.mxu0 %v117
    %121 = vmatpush.msra.mxu0 %v116
    %122 = vmatpush.msra.mxu0 %v115
    %123 = vmatpush.msra.mxu0 %v114
    %124 = vmatpush.msra.mxu0 %v113
    %125 = vmatpush.msra.mxu0 %v112
    %126 = vmatpush.msra.mxu0 %v111
    %127 = vmatpush.msra.mxu0 %v110
    %128 = vmatpush.msra.mxu0 %v109
    %129 = vmatpush.msra.mxu0 %v108
    %130 = vmatpush.msra.mxu0 %v107
    %131 = vmatpush.msra.mxu0 %v106
    %132 = vmatpush.msra.mxu0 %v105
    %133 = vmatpush.msra.mxu0 %v104
    %134 = vmatpush.msra.mxu0 %v103
    %135 = vmatmul.f32.gmra.mxu0 %v102
    %v136 = vpop.f32.mrf.mxu0
    %v137 = vadd.f32 0.0, %v136
    %138 = vdwg.mxu0
    %v139 = vmax.f32 %v137, 0.0
    %v140 = vld [vmem:[#allocation7] sm:$0xff]
    %v141 = vld [vmem:[#allocation7 + $0x8] sm:$0xff]
    %v142 = vld [vmem:[#allocation7 + $0x10] sm:$0xff]
    %v143 = vld [vmem:[#allocation7 + $0x18] sm:$0xff]
    %v144 = vld [vmem:[#allocation7 + $0x20] sm:$0xff]
    %v145 = vld [vmem:[#allocation7 + $0x28] sm:$0xff]
    %v146 = vld [vmem:[#allocation7 + $0x30] sm:$0xff]
    %v147 = vld [vmem:[#allocation7 + $0x38] sm:$0xff]
    %v148 = vld [vmem:[#allocation7 + $0x40] sm:$0xff]
    %v149 = vld [vmem:[#allocation7 + $0x48] sm:$0xff]
    %v150 = vld [vmem:[#allocation7 + $0x50] sm:$0xff]
    %v151 = vld [vmem:[#allocation7 + $0x58] sm:$0xff]
    %v152 = vld [vmem:[#allocation7 + $0x60] sm:$0xff]
    %v153 = vld [vmem:[#allocation7 + $0x68] sm:$0xff]
    %v154 = vld [vmem:[#allocation7 + $0x70] sm:$0xff]
    %v155 = vld [vmem:[#allocation7 + $0x78] sm:$0xff]
    %156 = vmatpush.msra.mxu0 %v155
    %157 = vmatpush.msra.mxu0 %v154
    %158 = vmatpush.msra.mxu0 %v153
    %159 = vmatpush.msra.mxu0 %v152
    %160 = vmatpush.msra.mxu0 %v151
    %161 = vmatpush.msra.mxu0 %v150
    %162 = vmatpush.msra.mxu0 %v149
    %163 = vmatpush.msra.mxu0 %v148
    %164 = vmatpush.msra.mxu0 %v147
    %165 = vmatpush.msra.mxu0 %v146
    %166 = vmatpush.msra.mxu0 %v145
    %167 = vmatpush.msra.mxu0 %v144
    %168 = vmatpush.msra.mxu0 %v143
    %169 = vmatpush.msra.mxu0 %v142
    %170 = vmatpush.msra.mxu0 %v141
    %171 = vmatpush.msra.mxu0 %v140
    %172 = vmatmul.f32.gmra.mxu0 %v139
    %v173 = vpop.f32.mrf.mxu0
    %v174 = vadd.f32 0.0, %v173
    %175 = vdwg.mxu0
    %v176 = vrot.slane %v174, 4
    %v177 = vmax.f32 %v174, %v176
    %v178 = vrot.slane %v177, 2
    %v179 = vmax.f32 %v177, %v178
    %v180 = vrot.slane %v179, 1
    %v181 = vmax.f32 %v179, %v180
    %v182 = vsub.f32 %v174, %v181
    %v183 = vmul.f32 %v182, 1.442695
    %v184 = vpow.pop %v183
    %v185 = vrot.slane %v184, 4
    %v186 = vadd.f32 %v184, %v185
    %v187 = vrot.slane %v186, 2
    %v188 = vadd.f32 %v186, %v187
    %v189 = vrot.slane %v188, 1
    %v190 = vadd.f32 %v188, %v189
    %v191 = vrcp.pop %v190
    %v192 = vmul.f32 %v190, %v191
    %v193 = vsub.f32 1.0, %v192
    %v194 = vmul.f32 %v191, %v193
    %v195 = vadd.f32 %v191, %v194
    %vm196 = vweird.f32 %v190
    %vm197 = vweird.f32 %v191
    %vm198 = vmor %vm196, %vm197
    %v199 = vsel %vm198, %v191, %v195
    %v200 = vand.u32 2147483647, %v190
    %vm201 = vcmp.eq.f32.partialorder %v200, 8.507059e+37
    %v202 = vand.u32 %v190, 2147483648
    %v203 = vor.u32 1.1754944e-38, %v202
    %v204 = vsel %vm201, %v203, %v199
    %v205 = vmul.f32 %v184, %v204
    %206 = vst [vmem:[#allocation8] sm:$0xff] %v205
    // Predicated region
    $region30: #{_stacked_forward_impl.1} parent=1 // pred_check
      _
    $region31: #{_stacked_forward_impl.1} parent=1 // pred_check_branch
      %208 = sbr.rel (0) target = $region33
    $region32: #{_stacked_forward_impl.1} parent=1 // pred_region
      %210 = vsyncadd [#allocation4], 0
      %s212 = sshll.u32 [#allocation8], 4
      %s213 = int_to_ptr.vmem [resolvable:$true] %s212
      %s214 = sshll.u32 %s4, 4
      %s215 = int_to_ptr.hbm [resolvable:$true] %s214
      %217 = dma.vmem_to_hbm [thread:$0]  %s213, 128, %s215, [#allocation4]
    $region33: #{_stacked_forward_impl.1} parent=1 // pred_fallthru
      _
    // Predicated region
    $region34: #{_stacked_forward_impl.1} parent=1 // pred_check
      _
    $region35: #{_stacked_forward_impl.1} parent=1 // pred_check_branch
      %219 = sbr.rel (0) target = $region37
    $region36: #{_stacked_forward_impl.1} parent=1 // pred_region
      %221 = dma.done [#allocation4], 128
    $region37: #{_stacked_forward_impl.1} parent=1 // pred_fallthru
      _
    %222 = vsyncpa [#allocation3], 1
    %223 = vsyncpa [#allocation6], 1
    %224 = vsyncpa [#allocation4], 1

</llo_original>
